<compile_context>
chip_gen: v7x
topology: tpu7x:2x2x1
jax: 0.10.0
libtpu: 0.0.40
codegen_flags: <defaults>
</compile_context>

<pallas_src>
import jax
import jax.numpy as jnp
from jax import lax
from jax.experimental import pallas as pl
from jax.experimental.pallas import tpu as pltpu

# ----------------- small config consistent with LlamaAttention ----------------
HIDDEN = 64                      # config.hidden_size
NUM_HEADS = 4                    # config.num_attention_heads
NUM_KV_HEADS = 2                 # config.num_key_value_heads (GQA)
HEAD_DIM = HIDDEN // NUM_HEADS   # 16
HALF = HEAD_DIM // 2             # 8
SEQ = 8                          # number of tokens
ROPE_THETA = 10000.0

Q_SIZE = NUM_HEADS * HEAD_DIM          # 64
KV_SIZE = NUM_KV_HEADS * HEAD_DIM      # 32
QK_SIZE = Q_SIZE + KV_SIZE             # 96   (features that get RoPE)
QKV_SIZE = Q_SIZE + 2 * KV_SIZE        # 128
BIG_SIZE = QKV_SIZE + QK_SIZE          # 224  (qkv + rotate_half(qk) columns)
SCALING = HEAD_DIM ** -0.5
GROUP = NUM_HEADS // NUM_KV_HEADS      # 2


# ------------------------------ fused kernel ----------------------------------
def _fused_attention_kernel(x_ref, w_big_ref, wo_ref, cos_ref, sin_ref, o_ref):
    """qkv matmul (+folded rotate_half) -> RoPE -> causal GQA attn -> o_proj."""
    # ---- one MXU pass produces qkv AND rotate_half(q|k) ---------------------
    x = x_ref[...].astype(jnp.bfloat16)
    y = jnp.dot(x, w_big_ref[...], preferred_element_type=jnp.float32)  # [S, 224]

    qk = y[:, :QK_SIZE]              # [S, 96]   packed q|k, head-major lanes
    v = y[:, QK_SIZE:QKV_SIZE]       # [S, 32]   packed v
    qk_rot = y[:, QKV_SIZE:]         # [S, 96]   rotate_half(q|k) (lane-aligned at 128)

    # ---- RoPE: lane-dense fused multiply-add in f32 (VPU) --------------------
    qk = qk * cos_ref[...] + qk_rot * sin_ref[...]                      # [S, 96]

    # ---- per-kv-head-group attention: only a causal mask is needed ----------
    attn_groups = []
    for g in range(NUM_KV_HEADS):
        # query heads of this group are contiguous lanes in the packed layout
        q_g = qk[:, g * GROUP * HEAD_DIM:(g + 1) * GROUP * HEAD_DIM]    # [S, G*D]
        k_g = qk[:, Q_SIZE + g * HEAD_DIM:Q_SIZE + (g + 1) * HEAD_DIM]  # [S, D]
        v_g = v[:, g * HEAD_DIM:(g + 1) * HEAD_DIM]                     # [S, D]

        # stack the GROUP member heads along rows -> [G*S, D]
        q_rows = jnp.concatenate(
            [q_g[:, m * HEAD_DIM:(m + 1) * HEAD_DIM] for m in range(GROUP)],
            axis=0)

        # scores: contract last dims (no explicit k.T), bf16 in / f32 acc
        s = lax.dot_general(
            q_rows.astype(jnp.bfloat16), k_g.astype(jnp.bfloat16),
            (((1,), (1,)), ((), ())),
            preferred_element_type=jnp.float32) * SCALING               # [G*S, S]

        # causal mask only (the group mask is gone by construction)
        row = lax.broadcasted_iota(jnp.int32, s.shape, 0) % SEQ
        col = lax.broadcasted_iota(jnp.int32, s.shape, 1)
        s = jnp.where(col <= row, s, -1e30)

        # softmax in f32; EUP reciprocal instead of dividing the whole tile
        m = jnp.max(s, axis=-1, keepdims=True)
        p = jnp.exp(s - m)
        p = p * pl.reciprocal(jnp.sum(p, axis=-1, keepdims=True), approx=True)

        # weighted values, bf16 in / f32 acc
        o_g = jnp.dot(p.astype(jnp.bfloat16), v_g.astype(jnp.bfloat16),
                      preferred_element_type=jnp.float32)               # [G*S, D]

        # re-pack member heads back onto lanes: [S, G*D]
        attn_groups.append(jnp.concatenate(
            [o_g[m * SEQ:(m + 1) * SEQ, :] for m in range(GROUP)], axis=-1))

    attn = jnp.concatenate(attn_groups, axis=-1)                        # [S, H*D]

    # ---- output projection ----------------------------------------------------
    o_ref[...] = jnp.dot(
        attn.astype(jnp.bfloat16), wo_ref[...],
        preferred_element_type=jnp.float32).astype(o_ref.dtype)


# --------------------------- wrapper / glue -----------------------------------
def rope_tables(positions):
    """Base cos/sin tables, [S, HEAD_DIM] each."""
    inv_freq = 1.0 / (
        ROPE_THETA ** (jnp.arange(0, HEAD_DIM, 2, dtype=jnp.float32) / HEAD_DIM))
    freqs = positions.astype(jnp.float32)[:, None] * inv_freq[None, :]   # [S, D/2]
    emb = jnp.concatenate([freqs, freqs], axis=-1)                       # [S, D]
    return jnp.cos(emb), jnp.sin(emb)


def packed_rope_tables(positions):
    """cos/sin pre-tiled to the packed q|k feature layout [S, QK_SIZE]."""
    cos, sin = rope_tables(positions)
    reps = NUM_HEADS + NUM_KV_HEADS
    return jnp.tile(cos, (1, reps)), jnp.tile(sin, (1, reps))


def prepare_weights(w_qkv, w_o):
    """Done ONCE outside the forward: transpose to lane-dense output layout,
    fold rotate_half into extra projection columns, cast MXU operands to bf16."""
    w_qkv_t = w_qkv.T.astype(jnp.float32)                 # [HIDDEN, QKV_SIZE]
    # rotate_half as a per-head signed permutation:  rot(y) = y @ R
    r_head = jnp.zeros((HEAD_DIM, HEAD_DIM), jnp.float32)
    r_head = r_head.at[HALF:, :HALF].set(-jnp.eye(HALF, dtype=jnp.float32))
    r_head = r_head.at[:HALF, HALF:].set(jnp.eye(HALF, dtype=jnp.float32))
    r_qk = jnp.kron(jnp.eye(NUM_HEADS + NUM_KV_HEADS, dtype=jnp.float32), r_head)
    w_qk_rot_t = w_qkv_t[:, :QK_SIZE] @ r_qk              # [HIDDEN, QK_SIZE]
    w_big = jnp.concatenate([w_qkv_t, w_qk_rot_t], axis=1)  # [HIDDEN, 224]
    return w_big.astype(jnp.bfloat16), w_o.T.astype(jnp.bfloat16)


@jax.jit
def llama_attention_forward(positions, hidden_states, w_big, w_o_t):
    """hidden_states: [S, HIDDEN] f32; w_big: [HIDDEN, 224] bf16; w_o_t: [Q_SIZE, HIDDEN] bf16."""
    cos, sin = packed_rope_tables(positions)

    flops = (2 * SEQ * HIDDEN * BIG_SIZE                   # qkv + folded rotate_half
             + 2 * (2 * NUM_HEADS * SEQ * SEQ * HEAD_DIM)  # scores + PV (per group, summed)
             + 2 * SEQ * Q_SIZE * HIDDEN)                  # o_proj
    cost = pl.CostEstimate(
        flops=flops,
        transcendentals=NUM_HEADS * SEQ * SEQ + NUM_HEADS * SEQ,
        bytes_accessed=(hidden_states.size * 4 + w_big.size * 2 + w_o_t.size * 2
                        + cos.size * 4 + sin.size * 4 + SEQ * HIDDEN * 4))

    vmem = pl.BlockSpec(memory_space=pltpu.MemorySpace.VMEM)
    # Every operand is a few KiB -> the whole problem lives in VMEM as a single
    # block: one launch, no grid, no per-head loop over pallas_calls.
    return pl.pallas_call(
        _fused_attention_kernel,
        out_shape=jax.ShapeDtypeStruct((SEQ, HIDDEN), hidden_states.dtype),
        in_specs=[vmem, vmem, vmem, vmem, vmem],
        out_specs=vmem,
        compiler_params=pltpu.CompilerParams(vmem_limit_bytes=32 * 1024 * 1024),
        cost_estimate=cost,
    )(hidden_states, w_big, w_o_t, cos, sin)


# ------------------------ pure-JAX reference (check) --------------------------
def reference_forward(positions, hidden_states, w_qkv, w_o):
    qkv = hidden_states @ w_qkv.T
    q, k, v = jnp.split(qkv, [Q_SIZE, Q_SIZE + KV_SIZE], axis=1)
    qh = q.reshape(SEQ, NUM_HEADS, HEAD_DIM).transpose(1, 0, 2)
    kh = k.reshape(SEQ, NUM_KV_HEADS, HEAD_DIM).transpose(1, 0, 2)
    vh = v.reshape(SEQ, NUM_KV_HEADS, HEAD_DIM).transpose(1, 0, 2)
    cos, sin = rope_tables(positions)

    def rot(x):
        x1, x2 = x[..., :HALF], x[..., HALF:]
        return jnp.concatenate([-x2, x1], axis=-1)

    qh = qh * cos[None] + rot(qh) * sin[None]
    kh = kh * cos[None] + rot(kh) * sin[None]
    kh = jnp.repeat(kh, GROUP, axis=0)
    vh = jnp.repeat(vh, GROUP, axis=0)
    s = jnp.einsum("hqd,hkd->hqk", qh, kh) * SCALING
    mask = jnp.tril(jnp.ones((SEQ, SEQ), bool))
    s = jnp.where(mask[None], s, -1e30)
    p = jax.nn.softmax(s, axis=-1)
    o = jnp.einsum("hqk,hkd->hqd", p, vh)
    return o.transpose(1, 0, 2).reshape(SEQ, Q_SIZE) @ w_o.T


if __name__ == "__main__":
    key = jax.random.PRNGKey(0)
    k1, k2, k3 = jax.random.split(key, 3)

    hidden_states = jax.random.normal(k1, (SEQ, HIDDEN), dtype=jnp.float32)
    # torch nn.Linear weights are [out_features, in_features]
    w_qkv = 0.05 * jax.random.normal(k2, (QKV_SIZE, HIDDEN), dtype=jnp.float32)
    w_o = 0.05 * jax.random.normal(k3, (HIDDEN, Q_SIZE), dtype=jnp.float32)
    positions = jnp.arange(SEQ, dtype=jnp.int32)

    # Pre-transpose + fold rotate_half into the weights + cast to bf16, ONCE.
    w_big, w_o_t = prepare_weights(w_qkv, w_o)

    out = llama_attention_forward(positions, hidden_states, w_big, w_o_t)
    out = jax.block_until_ready(out)

    ref = reference_forward(positions, hidden_states, w_qkv, w_o)
    err = float(jnp.max(jnp.abs(out - ref)))
    assert out.shape == (SEQ, HIDDEN)
    # bf16 MXU inputs (f32 accumulation) vs an all-f32 reference -> tolerance
    # relaxed from 2e-3 to 2e-2; observed error is a few 1e-3.
    assert jnp.allclose(out, ref, rtol=2e-2, atol=2e-2), err
    print("KERNEL_OK")
</pallas_src>

<mosaic_0001>
module attributes {stable_mosaic.version = 11 : i64} {
  func.func @_fused_attention_kernel(%arg0: memref<8x64xf32, #tpu.memory_space<vmem>>, %arg1: memref<64x224xbf16, #tpu.memory_space<vmem>>, %arg2: memref<64x64xbf16, #tpu.memory_space<vmem>>, %arg3: memref<8x96xf32, #tpu.memory_space<vmem>>, %arg4: memref<8x96xf32, #tpu.memory_space<vmem>>, %arg5: memref<8x64xf32, #tpu.memory_space<vmem>>) attributes {dimension_semantics = [], scalar_prefetch = 0 : i64, scratch_operands = 0 : i64, tpu.core_type = #tpu.core_type<tc>} {
    %c0 = arith.constant 0 : index
    %c0_0 = arith.constant 0 : index
    %0 = vector.load %arg0[%c0, %c0_0] : memref<8x64xf32, #tpu.memory_space<vmem>>, vector<8x64xf32>
    %1 = arith.truncf %0 : vector<8x64xf32> to vector<8x64xbf16>
    %c0_1 = arith.constant 0 : index
    %c0_2 = arith.constant 0 : index
    %2 = vector.load %arg1[%c0_1, %c0_2] : memref<64x224xbf16, #tpu.memory_space<vmem>>, vector<64x224xbf16>
    %cst = arith.constant dense<0.000000e+00> : vector<8x224xf32>
    %3 = tpu.matmul %1, %2, %cst {dimension_numbers = #tpu.dot_dimension_numbers<[1], [0], [0], [1], [0, 0, 1, 1], [], []>} : vector<8x64xbf16>, vector<64x224xbf16>, vector<8x224xf32> -> vector<8x224xf32>
    %4 = vector.extract_strided_slice %3 {offsets = [0, 0], sizes = [8, 96], strides = [1, 1]} : vector<8x224xf32> to vector<8x96xf32>
    %5 = vector.extract_strided_slice %3 {offsets = [0, 96], sizes = [8, 32], strides = [1, 1]} : vector<8x224xf32> to vector<8x32xf32>
    %6 = vector.extract_strided_slice %3 {offsets = [0, 128], sizes = [8, 96], strides = [1, 1]} : vector<8x224xf32> to vector<8x96xf32>
    %c0_3 = arith.constant 0 : index
    %c0_4 = arith.constant 0 : index
    %7 = vector.load %arg3[%c0_3, %c0_4] : memref<8x96xf32, #tpu.memory_space<vmem>>, vector<8x96xf32>
    %8 = arith.mulf %4, %7 : vector<8x96xf32>
    %c0_5 = arith.constant 0 : index
    %c0_6 = arith.constant 0 : index
    %9 = vector.load %arg4[%c0_5, %c0_6] : memref<8x96xf32, #tpu.memory_space<vmem>>, vector<8x96xf32>
    %10 = arith.mulf %6, %9 : vector<8x96xf32>
    %11 = arith.addf %8, %10 : vector<8x96xf32>
    %12 = vector.extract_strided_slice %11 {offsets = [0, 0], sizes = [8, 32], strides = [1, 1]} : vector<8x96xf32> to vector<8x32xf32>
    %13 = vector.extract_strided_slice %11 {offsets = [0, 64], sizes = [8, 16], strides = [1, 1]} : vector<8x96xf32> to vector<8x16xf32>
    %14 = vector.extract_strided_slice %5 {offsets = [0, 0], sizes = [8, 16], strides = [1, 1]} : vector<8x32xf32> to vector<8x16xf32>
    %15 = vector.extract_strided_slice %12 {offsets = [0, 0], sizes = [8, 16], strides = [1, 1]} : vector<8x32xf32> to vector<8x16xf32>
    %16 = vector.extract_strided_slice %12 {offsets = [0, 16], sizes = [8, 16], strides = [1, 1]} : vector<8x32xf32> to vector<8x16xf32>
    %17 = tpu.concatenate %15, %16 in 0 : vector<8x16xf32>, vector<8x16xf32> -> vector<16x16xf32>
    %18 = arith.truncf %17 : vector<16x16xf32> to vector<16x16xbf16>
    %19 = arith.truncf %13 : vector<8x16xf32> to vector<8x16xbf16>
    %cst_7 = arith.constant dense<0.000000e+00> : vector<16x8xf32>
    %20 = tpu.matmul %18, %19, %cst_7 {dimension_numbers = #tpu.dot_dimension_numbers<[1], [1], [0], [0], [0, 0, 1, 0], [], []>} : vector<16x16xbf16>, vector<8x16xbf16>, vector<16x8xf32> -> vector<16x8xf32>
    %cst_8 = arith.constant 2.500000e-01 : f32
    %21 = vector.broadcast %cst_8 : f32 to vector<16x8xf32>
    %22 = arith.mulf %20, %21 : vector<16x8xf32>
    %23 = tpu.iota {dimensions = array<i32: 0>} : vector<16x8xi32>
    %c8_i32 = arith.constant 8 : i32
    %c0_i32 = arith.constant 0 : i32
    %24 = arith.cmpi eq, %c8_i32, %c0_i32 : i32
    %c1_i32 = arith.constant 1 : i32
    %25 = arith.select %24, %c1_i32, %c8_i32 : i32
    %26 = vector.broadcast %25 : i32 to vector<16x8xi32>
    %27 = arith.remsi %23, %26 : vector<16x8xi32>
    %c0_i32_9 = arith.constant 0 : i32
    %28 = vector.broadcast %c0_i32_9 : i32 to vector<16x8xi32>
    %29 = arith.cmpi ne, %27, %28 : vector<16x8xi32>
    %c0_i32_10 = arith.constant 0 : i32
    %30 = vector.broadcast %c0_i32_10 : i32 to vector<16x8xi32>
    %31 = arith.cmpi slt, %27, %30 : vector<16x8xi32>
    %c0_i32_11 = arith.constant 0 : i32
    %32 = arith.cmpi slt, %25, %c0_i32_11 : i32
    %33 = vector.broadcast %32 : i1 to vector<16x8xi1>
    %34 = vector.broadcast %33 : vector<16x8xi1> to vector<16x8xi1>
    %35 = arith.xori %31, %34 : vector<16x8xi1>
    %36 = arith.andi %35, %29 : vector<16x8xi1>
    %37 = vector.broadcast %25 : i32 to vector<16x8xi32>
    %38 = arith.addi %27, %37 : vector<16x8xi32>
    %39 = arith.select %36, %38, %27 : vector<16x8xi1>, vector<16x8xi32>
    %40 = tpu.iota {dimensions = array<i32: 1>} : vector<16x8xi32>
    %41 = arith.cmpi sle, %40, %39 : vector<16x8xi32>
    %cst_12 = arith.constant -1.000000e+30 : f32
    %42 = vector.broadcast %cst_12 : f32 to vector<16x8xf32>
    %43 = arith.select %41, %22, %42 : vector<16x8xi1>, vector<16x8xf32>
    %cst_13 = arith.constant dense<0xFF800000> : vector<16xf32>
    %44 = vector.multi_reduction <maximumf>, %43, %cst_13 [1] : vector<16x8xf32> to vector<16xf32>
    %45 = vector.shape_cast %44 : vector<16xf32> to vector<16x1xf32>
    %46 = vector.broadcast %45 : vector<16x1xf32> to vector<16x8xf32>
    %47 = arith.subf %43, %46 : vector<16x8xf32>
    %48 = math.exp %47 : vector<16x8xf32>
    %cst_14 = arith.constant dense<0.000000e+00> : vector<16xf32>
    %49 = vector.multi_reduction <add>, %48, %cst_14 [1] : vector<16x8xf32> to vector<16xf32>
    %50 = vector.shape_cast %49 : vector<16xf32> to vector<16x1xf32>
    %51 = tpu.reciprocal %50 {approx = true} : vector<16x1xf32> -> vector<16x1xf32>
    %52 = vector.broadcast %51 : vector<16x1xf32> to vector<16x8xf32>
    %53 = arith.mulf %48, %52 : vector<16x8xf32>
    %54 = arith.truncf %53 : vector<16x8xf32> to vector<16x8xbf16>
    %55 = arith.truncf %14 : vector<8x16xf32> to vector<8x16xbf16>
    %cst_15 = arith.constant dense<0.000000e+00> : vector<16x16xf32>
    %56 = tpu.matmul %54, %55, %cst_15 {dimension_numbers = #tpu.dot_dimension_numbers<[1], [0], [0], [1], [0, 0, 1, 1], [], []>} : vector<16x8xbf16>, vector<8x16xbf16>, vector<16x16xf32> -> vector<16x16xf32>
    %57 = vector.extract_strided_slice %56 {offsets = [0, 0], sizes = [8, 16], strides = [1, 1]} : vector<16x16xf32> to vector<8x16xf32>
    %58 = vector.extract_strided_slice %56 {offsets = [8, 0], sizes = [8, 16], strides = [1, 1]} : vector<16x16xf32> to vector<8x16xf32>
    %59 = tpu.concatenate %57, %58 in 1 : vector<8x16xf32>, vector<8x16xf32> -> vector<8x32xf32>
    %60 = vector.extract_strided_slice %11 {offsets = [0, 32], sizes = [8, 32], strides = [1, 1]} : vector<8x96xf32> to vector<8x32xf32>
    %61 = vector.extract_strided_slice %11 {offsets = [0, 80], sizes = [8, 16], strides = [1, 1]} : vector<8x96xf32> to vector<8x16xf32>
    %62 = vector.extract_strided_slice %5 {offsets = [0, 16], sizes = [8, 16], strides = [1, 1]} : vector<8x32xf32> to vector<8x16xf32>
    %63 = vector.extract_strided_slice %60 {offsets = [0, 0], sizes = [8, 16], strides = [1, 1]} : vector<8x32xf32> to vector<8x16xf32>
    %64 = vector.extract_strided_slice %60 {offsets = [0, 16], sizes = [8, 16], strides = [1, 1]} : vector<8x32xf32> to vector<8x16xf32>
    %65 = tpu.concatenate %63, %64 in 0 : vector<8x16xf32>, vector<8x16xf32> -> vector<16x16xf32>
    %66 = arith.truncf %65 : vector<16x16xf32> to vector<16x16xbf16>
    %67 = arith.truncf %61 : vector<8x16xf32> to vector<8x16xbf16>
    %cst_16 = arith.constant dense<0.000000e+00> : vector<16x8xf32>
    %68 = tpu.matmul %66, %67, %cst_16 {dimension_numbers = #tpu.dot_dimension_numbers<[1], [1], [0], [0], [0, 0, 1, 0], [], []>} : vector<16x16xbf16>, vector<8x16xbf16>, vector<16x8xf32> -> vector<16x8xf32>
    %cst_17 = arith.constant 2.500000e-01 : f32
    %69 = vector.broadcast %cst_17 : f32 to vector<16x8xf32>
    %70 = arith.mulf %68, %69 : vector<16x8xf32>
    %71 = tpu.iota {dimensions = array<i32: 0>} : vector<16x8xi32>
    %c8_i32_18 = arith.constant 8 : i32
    %c0_i32_19 = arith.constant 0 : i32
    %72 = arith.cmpi eq, %c8_i32_18, %c0_i32_19 : i32
    %c1_i32_20 = arith.constant 1 : i32
    %73 = arith.select %72, %c1_i32_20, %c8_i32_18 : i32
    %74 = vector.broadcast %73 : i32 to vector<16x8xi32>
    %75 = arith.remsi %71, %74 : vector<16x8xi32>
    %c0_i32_21 = arith.constant 0 : i32
    %76 = vector.broadcast %c0_i32_21 : i32 to vector<16x8xi32>
    %77 = arith.cmpi ne, %75, %76 : vector<16x8xi32>
    %c0_i32_22 = arith.constant 0 : i32
    %78 = vector.broadcast %c0_i32_22 : i32 to vector<16x8xi32>
    %79 = arith.cmpi slt, %75, %78 : vector<16x8xi32>
    %c0_i32_23 = arith.constant 0 : i32
    %80 = arith.cmpi slt, %73, %c0_i32_23 : i32
    %81 = vector.broadcast %80 : i1 to vector<16x8xi1>
    %82 = vector.broadcast %81 : vector<16x8xi1> to vector<16x8xi1>
    %83 = arith.xori %79, %82 : vector<16x8xi1>
    %84 = arith.andi %83, %77 : vector<16x8xi1>
    %85 = vector.broadcast %73 : i32 to vector<16x8xi32>
    %86 = arith.addi %75, %85 : vector<16x8xi32>
    %87 = arith.select %84, %86, %75 : vector<16x8xi1>, vector<16x8xi32>
    %88 = tpu.iota {dimensions = array<i32: 1>} : vector<16x8xi32>
    %89 = arith.cmpi sle, %88, %87 : vector<16x8xi32>
    %cst_24 = arith.constant -1.000000e+30 : f32
    %90 = vector.broadcast %cst_24 : f32 to vector<16x8xf32>
    %91 = arith.select %89, %70, %90 : vector<16x8xi1>, vector<16x8xf32>
    %cst_25 = arith.constant dense<0xFF800000> : vector<16xf32>
    %92 = vector.multi_reduction <maximumf>, %91, %cst_25 [1] : vector<16x8xf32> to vector<16xf32>
    %93 = vector.shape_cast %92 : vector<16xf32> to vector<16x1xf32>
    %94 = vector.broadcast %93 : vector<16x1xf32> to vector<16x8xf32>
    %95 = arith.subf %91, %94 : vector<16x8xf32>
    %96 = math.exp %95 : vector<16x8xf32>
    %cst_26 = arith.constant dense<0.000000e+00> : vector<16xf32>
    %97 = vector.multi_reduction <add>, %96, %cst_26 [1] : vector<16x8xf32> to vector<16xf32>
    %98 = vector.shape_cast %97 : vector<16xf32> to vector<16x1xf32>
    %99 = tpu.reciprocal %98 {approx = true} : vector<16x1xf32> -> vector<16x1xf32>
    %100 = vector.broadcast %99 : vector<16x1xf32> to vector<16x8xf32>
    %101 = arith.mulf %96, %100 : vector<16x8xf32>
    %102 = arith.truncf %101 : vector<16x8xf32> to vector<16x8xbf16>
    %103 = arith.truncf %62 : vector<8x16xf32> to vector<8x16xbf16>
    %cst_27 = arith.constant dense<0.000000e+00> : vector<16x16xf32>
    %104 = tpu.matmul %102, %103, %cst_27 {dimension_numbers = #tpu.dot_dimension_numbers<[1], [0], [0], [1], [0, 0, 1, 1], [], []>} : vector<16x8xbf16>, vector<8x16xbf16>, vector<16x16xf32> -> vector<16x16xf32>
    %105 = vector.extract_strided_slice %104 {offsets = [0, 0], sizes = [8, 16], strides = [1, 1]} : vector<16x16xf32> to vector<8x16xf32>
    %106 = vector.extract_strided_slice %104 {offsets = [8, 0], sizes = [8, 16], strides = [1, 1]} : vector<16x16xf32> to vector<8x16xf32>
    %107 = tpu.concatenate %105, %106 in 1 : vector<8x16xf32>, vector<8x16xf32> -> vector<8x32xf32>
    %108 = tpu.concatenate %59, %107 in 1 : vector<8x32xf32>, vector<8x32xf32> -> vector<8x64xf32>
    %109 = arith.truncf %108 : vector<8x64xf32> to vector<8x64xbf16>
    %c0_28 = arith.constant 0 : index
    %c0_29 = arith.constant 0 : index
    %110 = vector.load %arg2[%c0_28, %c0_29] : memref<64x64xbf16, #tpu.memory_space<vmem>>, vector<64x64xbf16>
    %cst_30 = arith.constant dense<0.000000e+00> : vector<8x64xf32>
    %111 = tpu.matmul %109, %110, %cst_30 {dimension_numbers = #tpu.dot_dimension_numbers<[1], [0], [0], [1], [0, 0, 1, 1], [], []>} : vector<8x64xbf16>, vector<64x64xbf16>, vector<8x64xf32> -> vector<8x64xf32>
    %c0_31 = arith.constant 0 : index
    %c0_32 = arith.constant 0 : index
    %112 = vector.load %arg5[%c0_31, %c0_32] : memref<8x64xf32, #tpu.memory_space<vmem>>, vector<8x64xf32>
    tpu.vector_store %arg5[%c0_31, %c0_32], %111 {strides = array<i32>} : memref<8x64xf32, #tpu.memory_space<vmem>>, vector<8x64xf32>,
    return
  }
}

</mosaic_0001>

<llo_original>
// kernel: tile.19
$region0: #{tile.19}
  %s0 = inlined_call_operand.vmem [shape: f32[8,6,16], index: 0, kind: input, shape index: {}]
  %s1 = inlined_call_operand.vmem [shape: f32[8,96], index: 1, kind: output, shape index: {}]
  %v2 = vld [vmem:[%s0] ss:$8 sm:$0xf]
  %v3 = vld [vmem:[%s0] ss:$8 sm:$0xf0]
  %vm4 = vcmask 1047556
  %v5 = vsel %vm4, %v3, %v2
  %vm6 = vcmask 130048
  %7 = vst.msk [vmem:[%s1] sm:$0xff] %vm6, %v5
  %s8 = scalar_lea.vmem %s0, 5
  %v9 = vld [vmem:[%s8] ss:$8 sm:$0xf]
  %s10 = scalar_lea.vmem %s0, 5
  %v11 = vld [vmem:[%s10] ss:$8 sm:$0xf0]
  %vm12 = vcmask 1047556
  %v13 = vsel %vm12, %v11, %v9
  %14 = vrot.lane.b32.xlu0 %v13, 80
  %v15 = vpop.permute.xlu0 %14
  %vm16 = vcmask 786048
  %17 = vst.msk [vmem:[%s1] sm:$0xff] %vm16, %v15
  %s18 = scalar_lea.vmem %s0, 4
  %v19 = vld [vmem:[%s18] ss:$8 sm:$0xf]
  %s20 = scalar_lea.vmem %s0, 4
  %v21 = vld [vmem:[%s20] ss:$8 sm:$0xf0]
  %vm22 = vcmask 1047556
  %v23 = vsel %vm22, %v21, %v19
  %24 = vrot.lane.b32.xlu0 %v23, 64
  %v25 = vpop.permute.xlu0 %24
  %vm26 = vcmask 654848
  %27 = vst.msk [vmem:[%s1] sm:$0xff] %vm26, %v25
  %s28 = scalar_lea.vmem %s0, 3
  %v29 = vld [vmem:[%s28] ss:$8 sm:$0xf]
  %s30 = scalar_lea.vmem %s0, 3
  %v31 = vld [vmem:[%s30] ss:$8 sm:$0xf0]
  %vm32 = vcmask 1047556
  %v33 = vsel %vm32, %v31, %v29
  %34 = vrot.lane.b32.xlu0 %v33, 48
  %v35 = vpop.permute.xlu0 %34
  %vm36 = vcmask 523648
  %37 = vst.msk [vmem:[%s1] sm:$0xff] %vm36, %v35
  %s38 = scalar_lea.vmem %s0, 2
  %v39 = vld [vmem:[%s38] ss:$8 sm:$0xf]
  %s40 = scalar_lea.vmem %s0, 2
  %v41 = vld [vmem:[%s40] ss:$8 sm:$0xf0]
  %vm42 = vcmask 1047556
  %v43 = vsel %vm42, %v41, %v39
  %44 = vrot.lane.b32.xlu0 %v43, 32
  %v45 = vpop.permute.xlu0 %44
  %vm46 = vcmask 392448
  %47 = vst.msk [vmem:[%s1] sm:$0xff] %vm46, %v45
  %s48 = scalar_lea.vmem %s0, 1
  %v49 = vld [vmem:[%s48] ss:$8 sm:$0xf]
  %s50 = scalar_lea.vmem %s0, 1
  %v51 = vld [vmem:[%s50] ss:$8 sm:$0xf0]
  %vm52 = vcmask 1047556
  %v53 = vsel %vm52, %v51, %v49
  %54 = vrot.lane.b32.xlu0 %v53, 16
  %v55 = vpop.permute.xlu0 %54
  %vm56 = vcmask 261248
  %57 = vst.msk [vmem:[%s1] sm:$0xff] %vm56, %v55

// kernel: llama_attention_forward.1
$region0: #{llama_attention_forward.1}
  #allocation0 [shape = 'u32[]', space=smem, size = 0x4, offset = 0x4, fixed_abs, tag = 'smem constant byte address 0x4 - core index']
  #allocation1 [shape = 'u32[144,128]{1,0:T(1,128)}', space=vmem, size = 0x12000, scoped, tag = 'internal scratch']
  %s0 = inlined_call_operand.vmem [shape: f32[8,64], index: 0, kind: input, shape index: {}]
  %s1 = inlined_call_operand.vmem [shape: bf16[64,224], index: 1, kind: input, shape index: {}]
  %s2 = inlined_call_operand.vmem [shape: bf16[64,64], index: 2, kind: input, shape index: {}]
  %s3 = inlined_call_operand.vmem [shape: f32[8,96], index: 3, kind: input, shape index: {}]
  %s4 = inlined_call_operand.vmem [shape: f32[8,96], index: 4, kind: input, shape index: {}]
  %s5 = inlined_call_operand.hbm [shape: f32[8,64], index: 5, kind: output, shape index: {}]
  %s6 = sld [smem:[#allocation0]]
  $region30: #{llama_attention_forward.1} parent=0
    _
  %s8 = ssub.s32 1, %s6
  %s9 = scalar_select 0, %s8, %s6
  $region1: #{llama_attention_forward.1} parent=0
    #allocation2 [shape = 'u8[4096]{0}', space=vmem, size = 0x1000, scoped, tag = 'output window, operand 0, single buffered']
    #allocation3 [shape = 's32[1]{0}', space=sflag, size = 0x4, scoped, tag = 'scoped memory for llama_attention_forward.1']
    %10 = vsyncpa [#allocation3], 0
    // Predicated region
    $region2: #{llama_attention_forward.1} parent=1 // pred_check
      _
    $region3: #{llama_attention_forward.1} parent=1 // pred_check_branch
      %12 = sbr.rel (0) target = $region5
    $region4: #{llama_attention_forward.1} parent=1 // pred_region
      _
    $region5: #{llama_attention_forward.1} parent=1 // pred_fallthru
      _
    // Predicated region
    $region6: #{llama_attention_forward.1} parent=1 // pred_check
      _
    $region7: #{llama_attention_forward.1} parent=1 // pred_check_branch
      %14 = sbr.rel (0) target = $region9
    $region8: #{llama_attention_forward.1} parent=1 // pred_region
      _
    $region9: #{llama_attention_forward.1} parent=1 // pred_fallthru
      _
    // Predicated region
    $region10: #{llama_attention_forward.1} parent=1 // pred_check
      _
    $region11: #{llama_attention_forward.1} parent=1 // pred_check_branch
      %16 = sbr.rel (0) target = $region13
    $region12: #{llama_attention_forward.1} parent=1 // pred_region
      _
    $region13: #{llama_attention_forward.1} parent=1 // pred_fallthru
      _
    // Predicated region
    $region14: #{llama_attention_forward.1} parent=1 // pred_check
      _
    $region15: #{llama_attention_forward.1} parent=1 // pred_check_branch
      %18 = sbr.rel (0) target = $region17
    $region16: #{llama_attention_forward.1} parent=1 // pred_region
      _
    $region17: #{llama_attention_forward.1} parent=1 // pred_fallthru
      _
    // Predicated region
    $region18: #{llama_attention_forward.1} parent=1 // pred_check
      _
    $region19: #{llama_attention_forward.1} parent=1 // pred_check_branch
      %20 = sbr.rel (0) target = $region21
    $region20: #{llama_attention_forward.1} parent=1 // pred_region
      _
    $region21: #{llama_attention_forward.1} parent=1 // pred_fallthru
      _
    %v22 = vld [vmem:[%s0] sm:$0xff]
    %v23 = vpack.c.bf16 %v22, %v22
    %v24 = vld [vmem:[%s1] sm:$0xff]
    %v25 = vld [vmem:[%s1 + $0x8] sm:$0xff]
    %v26 = vld [vmem:[%s1 + $0x10] sm:$0xff]
    %v27 = vld [vmem:[%s1 + $0x18] sm:$0xff]
    %v28 = vld [vmem:[%s1 + $0x20] sm:$0xff]
    %v29 = vld [vmem:[%s1 + $0x28] sm:$0xff]
    %v30 = vld [vmem:[%s1 + $0x30] sm:$0xff]
    %v31 = vld [vmem:[%s1 + $0x38] sm:$0xff]
    %v40 = vunpack.c.l.b16 %v24
    %v41 = vunpack.c.h.b16 %v24
    %v42 = vunpack.c.l.b16 %v25
    %v43 = vunpack.c.h.b16 %v25
    %v44 = vunpack.c.l.b16 %v26
    %v45 = vunpack.c.h.b16 %v26
    %v46 = vunpack.c.l.b16 %v27
    %v47 = vunpack.c.h.b16 %v27
    %v48 = vunpack.c.l.b16 %v28
    %v49 = vunpack.c.h.b16 %v28
    %v50 = vunpack.c.l.b16 %v29
    %v51 = vunpack.c.h.b16 %v29
    %v52 = vunpack.c.l.b16 %v30
    %v53 = vunpack.c.h.b16 %v30
    %v54 = vunpack.c.l.b16 %v31
    %v55 = vunpack.c.h.b16 %v31
    %v56 = vpack.c.b16 %v42, %v40
    %v57 = vpack.c.b16 %v43, %v41
    %v58 = vpack.c.b16 %v46, %v44
    %v59 = vpack.c.b16 %v47, %v45
    %v60 = vpack.c.b16 %v50, %v48
    %v61 = vpack.c.b16 %v51, %v49
    %v62 = vpack.c.b16 %v54, %v52
    %v63 = vpack.c.b16 %v55, %v53
    %vm72 = vcmask 523264
    %v74 = vsel %vm72, %v23, 0
    %76 = vmatprep.subr.bf16.mxu0 %v57
    %77 = vmatpush1.bf16.msra.mxu0 %v56
    %78 = vmatprep.subr.bf16.mxu0 %v59
    %79 = vmatpush1.bf16.msra.mxu0 %v58
    %80 = vmatprep.subr.bf16.mxu0 %v61
    %81 = vmatpush1.bf16.msra.mxu0 %v60
    %82 = vmatprep.subr.bf16.mxu0 %v63
    %83 = vmatpush1.bf16.msra.mxu0 %v62
    %84 = vmatprep.subr.bf16.mxu0 0
    %85 = vmatpush1.bf16.msra.mxu0 0
    %86 = vmatprep.subr.bf16.mxu0 0
    %87 = vmatpush1.bf16.msra.mxu0 0
    %88 = vmatprep.subr.bf16.mxu0 0
    %89 = vmatpush1.bf16.msra.mxu0 0
    %90 = vmatprep.subr.bf16.mxu0 0
    %91 = vmatpush1.bf16.msra.mxu0 0
    %92 = vmatprep.subr.bf16.mxu0 0
    %93 = vmatpush1.bf16.msra.mxu0 0
    %94 = vmatprep.subr.bf16.mxu0 0
    %95 = vmatpush1.bf16.msra.mxu0 0
    %96 = vmatprep.subr.bf16.mxu0 0
    %97 = vmatpush1.bf16.msra.mxu0 0
    %98 = vmatprep.subr.bf16.mxu0 0
    %99 = vmatpush1.bf16.msra.mxu0 0
    %100 = vmatprep.subr.bf16.mxu0 0
    %101 = vmatpush1.bf16.msra.mxu0 0
    %102 = vmatprep.subr.bf16.mxu0 0
    %103 = vmatpush1.bf16.msra.mxu0 0
    %104 = vmatprep.subr.bf16.mxu0 0
    %105 = vmatpush1.bf16.msra.mxu0 0
    %106 = vmatprep.subr.bf16.mxu0 0
    %107 = vmatpush1.bf16.msra.mxu0 0
    %108 = vmatprep.mubr.bf16.mxu0 0
    %109 = vmatmul.mubr.bf16.gmra.mrb[0].mxu0 %v74
    %v110 = vpop.f32.mrb[0].mxu0
    %v111 = vadd.f32 0.0, %v110
    %v112 = vpop.f32.mrb[0].mxu0
    %v113 = vadd.f32 0.0, %v112
    %v114 = vpop.f32.mrb[0].mxu0
    %v115 = vpop.f32.mrb[0].mxu0
    %116 = vdwg.mxu0
    %v117 = vld [vmem:[%s3] sm:$0xff]
    %v118 = vmul.f32 %v111, %v117
    %v119 = vld [vmem:[%s4] sm:$0xff]
    %v120 = vmul.f32 %v113, %v119
    %v121 = vadd.f32 %v118, %v120
    %123 = vrot.lane.b32.xlu0 %v121, 112
    %v124 = vpop.permute.xlu0 %123
    %v126 = vpack.c.bf16 %v124, %v121
    %v127 = vpack.c.bf16 %v121, %v121
    %129 = vrot.lane.b32.xlu0 %v127, 64
    %v130 = vpop.permute.xlu0 %129
    %vm131 = vcmask 130048
    %v133 = vsel %vm131, %v126, 0
    %v136 = vsel %vm131, %v130, 0
    %138 = vmatprep.subr.bf16.mxu0 0
    %139 = vmatpush1.bf16.xpose.msra.mxu0 %v136
    %140 = vmatprep.subr.bf16.mxu0 0
    %141 = vmatpush1.bf16.xpose.msra.mxu0 0
    %142 = vmatprep.subr.bf16.mxu0 0
    %143 = vmatpush1.bf16.xpose.msra.mxu0 0
    %144 = vmatprep.subr.bf16.mxu0 0
    %145 = vmatpush1.bf16.xpose.msra.mxu0 0
    %146 = vmatprep.subr.bf16.mxu0 0
    %147 = vmatpush1.bf16.xpose.msra.mxu0 0
    %148 = vmatprep.subr.bf16.mxu0 0
    %149 = vmatpush1.bf16.xpose.msra.mxu0 0
    %150 = vmatprep.subr.bf16.mxu0 0
    %151 = vmatpush1.bf16.xpose.msra.mxu0 0
    %152 = vmatprep.subr.bf16.mxu0 0
    %153 = vmatpush1.bf16.xpose.msra.mxu0 0
    %154 = vmatprep.subr.bf16.mxu0 0
    %155 = vmatpush1.bf16.xpose.msra.mxu0 0
    %156 = vmatprep.subr.bf16.mxu0 0
    %157 = vmatpush1.bf16.xpose.msra.mxu0 0
    %158 = vmatprep.subr.bf16.mxu0 0
    %159 = vmatpush1.bf16.xpose.msra.mxu0 0
    %160 = vmatprep.subr.bf16.mxu0 0
    %161 = vmatpush1.bf16.xpose.msra.mxu0 0
    %162 = vmatprep.subr.bf16.mxu0 0
    %163 = vmatpush1.bf16.xpose.msra.mxu0 0
    %164 = vmatprep.subr.bf16.mxu0 0
    %165 = vmatpush1.bf16.xpose.msra.mxu0 0
    %166 = vmatprep.subr.bf16.mxu0 0
    %167 = vmatpush1.bf16.xpose.msra.mxu0 0
    %168 = vmatprep.subr.bf16.mxu0 0
    %169 = vmatpush1.bf16.xpose.msra.mxu0 0
    %170 = vmatprep.mubr.bf16.mxu0 0
    %171 = vmatmul.mubr.bf16.gmra.mrb[0].mxu0 %v133
    %v172 = vpop.f32.mrb[0].mxu0
    %v173 = vadd.f32 0.0, %v172
    %v174 = vpop.f32.mrb[0].mxu0
    %v175 = vpop.f32.mrb[0].mxu0
    %v176 = vadd.f32 0.0, %v175
    %v177 = vpop.f32.mrb[0].mxu0
    %178 = vdwg.mxu0
    %v179 = vmul.f32 %v173, 0.25
    %v180 = vmul.f32 %v176, 0.25
    %v181 = vlaneseq
    %v182 = vshrl.u32 %v181, 7
    %v183 = vadd.s32 %v182, 8
    %vm184 = vcmp.lt.s32.totalorder %v182, 0
    %v185 = vsub.s32 0, %v182
    %v186 = vsel %vm184, %v185, %v182
    %v187 = vshrl.u32 %v186, 3
    %v188 = vand.u32 %v186, 7
    %v189 = vsub.s32 0, %v188
    %v190 = vsel %vm184, %v189, %v188
    %vm191 = vcmp.lt.s32.totalorder %v183, 0
    %v192 = vsub.s32 0, %v183
    %v193 = vsel %vm191, %v192, %v183
    %v194 = vshrl.u32 %v193, 3
    %v195 = vand.u32 %v193, 7
    %v196 = vsub.s32 0, %v195
    %v197 = vsel %vm191, %v196, %v195
    %vm198 = vcmp.ne.s32.totalorder %v190, 0
    %vm199 = vcmp.ne.s32.totalorder %v197, 0
    %vm200 = vcmp.lt.s32.totalorder %v190, 0
    %vm201 = vcmp.lt.s32.totalorder %v197, 0
    %vm202 = vmand %vm200, %vm198
    %vm203 = vmand %vm201, %vm199
    %v204 = vadd.s32 %v190, 8
    %v205 = vadd.s32 %v197, 8
    %v206 = vsel %vm202, %v204, %v190
    %v207 = vsel %vm203, %v205, %v197
    %v208 = vlaneseq
    %v209 = vand.u32 %v208, 127
    %vm210 = vcmp.le.s32.totalorder %v209, %v206
    %vm211 = vcmp.le.s32.totalorder %v209, %v207
    %v212 = vsel %vm210, %v179, -1e+30
    %v213 = vsel %vm211, %v180, -1e+30
    %vm214 = vcmask 64512
    %v215 = vsel %vm214, %v212, -inf
    %216 = vmax.xlane.f32.xlu0 %v215
    %v217 = vpop.xlane.xlu0 %216
    %v218 = vsel %vm214, %v213, -inf
    %219 = vmax.xlane.f32.xlu0 %v218
    %v220 = vpop.xlane.xlu0 %219
    %v221 = vsub.f32 %v212, %v217
    %v222 = vsub.f32 %v213, %v220
    %v223 = vmul.f32 %v221, 1.442695
    %v224 = vpow.pop %v223
    %v225 = vmul.f32 %v222, 1.442695
    %v226 = vpow.pop %v225
    %v227 = vsel %vm214, %v224, 0.0
    %228 = vadd.xlane.f32.xlu0 %v227
    %v229 = vpop.xlane.xlu0 %228
    %v230 = vsel %vm214, %v226, 0.0
    %231 = vadd.xlane.f32.xlu0 %v230
    %v232 = vpop.xlane.xlu0 %231
    %v233 = vrcp.pop %v229
    %v234 = vrcp.pop %v232
    %v235 = vmul.f32 %v224, %v233
    %v236 = vmul.f32 %v226, %v234
    %v237 = vpack.c.bf16 %v236, %v235
    %v238 = vpack.c.bf16 %v111, %v111
    %240 = vrot.lane.b32.xlu0 %v238, 32
    %v241 = vpop.permute.xlu0 %240
    %v243 = vsel %vm214, %v237, 0
    %vm245 = vcmask 1043456
    %v247 = vsel %vm245, %v241, 0
    %249 = vmatprep.subr.bf16.mxu0 0
    %250 = vmatpush1.bf16.msra.mxu0 %v247
    %251 = vmatprep.subr.bf16.mxu0 0
    %252 = vmatpush1.bf16.msra.mxu0 0
    %253 = vmatprep.subr.bf16.mxu0 0
    %254 = vmatpush1.bf16.msra.mxu0 0
    %255 = vmatprep.subr.bf16.mxu0 0
    %256 = vmatpush1.bf16.msra.mxu0 0
    %257 = vmatprep.subr.bf16.mxu0 0
    %258 = vmatpush1.bf16.msra.mxu0 0
    %259 = vmatprep.subr.bf16.mxu0 0
    %260 = vmatpush1.bf16.msra.mxu0 0
    %261 = vmatprep.subr.bf16.mxu0 0
    %262 = vmatpush1.bf16.msra.mxu0 0
    %263 = vmatprep.subr.bf16.mxu0 0
    %264 = vmatpush1.bf16.msra.mxu0 0
    %265 = vmatprep.subr.bf16.mxu0 0
    %266 = vmatpush1.bf16.msra.mxu0 0
    %267 = vmatprep.subr.bf16.mxu0 0
    %268 = vmatpush1.bf16.msra.mxu0 0
    %269 = vmatprep.subr.bf16.mxu0 0
    %270 = vmatpush1.bf16.msra.mxu0 0
    %271 = vmatprep.subr.bf16.mxu0 0
    %272 = vmatpush1.bf16.msra.mxu0 0
    %273 = vmatprep.subr.bf16.mxu0 0
    %274 = vmatpush1.bf16.msra.mxu0 0
    %275 = vmatprep.subr.bf16.mxu0 0
    %276 = vmatpush1.bf16.msra.mxu0 0
    %277 = vmatprep.subr.bf16.mxu0 0
    %278 = vmatpush1.bf16.msra.mxu0 0
    %279 = vmatprep.subr.bf16.mxu0 0
    %280 = vmatpush1.bf16.msra.mxu0 0
    %281 = vmatprep.mubr.bf16.mxu0 0
    %282 = vmatmul.mubr.bf16.gmra.mrb[0].mxu0 %v243
    %v283 = vpop.f32.mrb[0].mxu0
    %v284 = vadd.f32 0.0, %v283
    %v285 = vpop.f32.mrb[0].mxu0
    %v286 = vpop.f32.mrb[0].mxu0
    %v287 = vadd.f32 0.0, %v286
    %v288 = vpop.f32.mrb[0].mxu0
    %289 = vdwg.mxu0
    %291 = vrot.lane.b32.xlu0 %v287, 16
    %v292 = vpop.permute.xlu0 %291
    %v294 = vsel %vm131, %v284, %v292
    %296 = vrot.lane.b32.xlu0 %v126, 96
    %v297 = vpop.permute.xlu0 %296
    %298 = vrot.lane.b32.xlu0 %v127, 48
    %v299 = vpop.permute.xlu0 %298
    %v301 = vsel %vm131, %v297, 0
    %v304 = vsel %vm131, %v299, 0
    %306 = vmatprep.subr.bf16.mxu0 0
    %307 = vmatpush1.bf16.xpose.msra.mxu0 %v304
    %308 = vmatprep.subr.bf16.mxu0 0
    %309 = vmatpush1.bf16.xpose.msra.mxu0 0
    %310 = vmatprep.subr.bf16.mxu0 0
    %311 = vmatpush1.bf16.xpose.msra.mxu0 0
    %312 = vmatprep.subr.bf16.mxu0 0
    %313 = vmatpush1.bf16.xpose.msra.mxu0 0
    %314 = vmatprep.subr.bf16.mxu0 0
    %315 = vmatpush1.bf16.xpose.msra.mxu0 0
    %316 = vmatprep.subr.bf16.mxu0 0
    %317 = vmatpush1.bf16.xpose.msra.mxu0 0
    %318 = vmatprep.subr.bf16.mxu0 0
    %319 = vmatpush1.bf16.xpose.msra.mxu0 0
    %320 = vmatprep.subr.bf16.mxu0 0
    %321 = vmatpush1.bf16.xpose.msra.mxu0 0
    %322 = vmatprep.subr.bf16.mxu0 0
    %323 = vmatpush1.bf16.xpose.msra.mxu0 0
    %324 = vmatprep.subr.bf16.mxu0 0
    %325 = vmatpush1.bf16.xpose.msra.mxu0 0
    %326 = vmatprep.subr.bf16.mxu0 0
    %327 = vmatpush1.bf16.xpose.msra.mxu0 0
    %328 = vmatprep.subr.bf16.mxu0 0
    %329 = vmatpush1.bf16.xpose.msra.mxu0 0
    %330 = vmatprep.subr.bf16.mxu0 0
    %331 = vmatpush1.bf16.xpose.msra.mxu0 0
    %332 = vmatprep.subr.bf16.mxu0 0
    %333 = vmatpush1.bf16.xpose.msra.mxu0 0
    %334 = vmatprep.subr.bf16.mxu0 0
    %335 = vmatpush1.bf16.xpose.msra.mxu0 0
    %336 = vmatprep.subr.bf16.mxu0 0
    %337 = vmatpush1.bf16.xpose.msra.mxu0 0
    %338 = vmatprep.mubr.bf16.mxu0 0
    %339 = vmatmul.mubr.bf16.gmra.mrb[0].mxu0 %v301
    %v340 = vpop.f32.mrb[0].mxu0
    %v341 = vadd.f32 0.0, %v340
    %v342 = vpop.f32.mrb[0].mxu0
    %v343 = vpop.f32.mrb[0].mxu0
    %v344 = vadd.f32 0.0, %v343
    %v345 = vpop.f32.mrb[0].mxu0
    %346 = vdwg.mxu0
    %v347 = vmul.f32 %v341, 0.25
    %v348 = vmul.f32 %v344, 0.25
    %v349 = vsel %vm210, %v347, -1e+30
    %v350 = vsel %vm211, %v348, -1e+30
    %v351 = vsel %vm214, %v349, -inf
    %352 = vmax.xlane.f32.xlu0 %v351
    %v353 = vpop.xlane.xlu0 %352
    %v354 = vsel %vm214, %v350, -inf
    %355 = vmax.xlane.f32.xlu0 %v354
    %v356 = vpop.xlane.xlu0 %355
    %v357 = vsub.f32 %v349, %v353
    %v358 = vsub.f32 %v350, %v356
    %v359 = vmul.f32 %v357, 1.442695
    %v360 = vpow.pop %v359
    %v361 = vmul.f32 %v358, 1.442695
    %v362 = vpow.pop %v361
    %v363 = vsel %vm214, %v360, 0.0
    %364 = vadd.xlane.f32.xlu0 %v363
    %v365 = vpop.xlane.xlu0 %364
    %v366 = vsel %vm214, %v362, 0.0
    %367 = vadd.xlane.f32.xlu0 %v366
    %v368 = vpop.xlane.xlu0 %367
    %v369 = vrcp.pop %v365
    %v370 = vrcp.pop %v368
    %v371 = vmul.f32 %v360, %v369
    %v372 = vmul.f32 %v362, %v370
    %v373 = vpack.c.bf16 %v372, %v371
    %374 = vrot.lane.b32.xlu0 %v238, 16
    %v375 = vpop.permute.xlu0 %374
    %v377 = vsel %vm214, %v373, 0
    %v380 = vsel %vm245, %v375, 0
    %382 = vmatprep.subr.bf16.mxu0 0
    %383 = vmatpush1.bf16.msra.mxu0 %v380
    %384 = vmatprep.subr.bf16.mxu0 0
    %385 = vmatpush1.bf16.msra.mxu0 0
    %386 = vmatprep.subr.bf16.mxu0 0
    %387 = vmatpush1.bf16.msra.mxu0 0
    %388 = vmatprep.subr.bf16.mxu0 0
    %389 = vmatpush1.bf16.msra.mxu0 0
    %390 = vmatprep.subr.bf16.mxu0 0
    %391 = vmatpush1.bf16.msra.mxu0 0
    %392 = vmatprep.subr.bf16.mxu0 0
    %393 = vmatpush1.bf16.msra.mxu0 0
    %394 = vmatprep.subr.bf16.mxu0 0
    %395 = vmatpush1.bf16.msra.mxu0 0
    %396 = vmatprep.subr.bf16.mxu0 0
    %397 = vmatpush1.bf16.msra.mxu0 0
    %398 = vmatprep.subr.bf16.mxu0 0
    %399 = vmatpush1.bf16.msra.mxu0 0
    %400 = vmatprep.subr.bf16.mxu0 0
    %401 = vmatpush1.bf16.msra.mxu0 0
    %402 = vmatprep.subr.bf16.mxu0 0
    %403 = vmatpush1.bf16.msra.mxu0 0
    %404 = vmatprep.subr.bf16.mxu0 0
    %405 = vmatpush1.bf16.msra.mxu0 0
    %406 = vmatprep.subr.bf16.mxu0 0
    %407 = vmatpush1.bf16.msra.mxu0 0
    %408 = vmatprep.subr.bf16.mxu0 0
    %409 = vmatpush1.bf16.msra.mxu0 0
    %410 = vmatprep.subr.bf16.mxu0 0
    %411 = vmatpush1.bf16.msra.mxu0 0
    %412 = vmatprep.subr.bf16.mxu0 0
    %413 = vmatpush1.bf16.msra.mxu0 0
    %414 = vmatprep.mubr.bf16.mxu0 0
    %415 = vmatmul.mubr.bf16.gmra.mrb[0].mxu0 %v377
    %v416 = vpop.f32.mrb[0].mxu0
    %v417 = vadd.f32 0.0, %v416
    %v418 = vpop.f32.mrb[0].mxu0
    %v419 = vpop.f32.mrb[0].mxu0
    %v420 = vadd.f32 0.0, %v419
    %v421 = vpop.f32.mrb[0].mxu0
    %422 = vdwg.mxu0
    %424 = vrot.lane.b32.xlu0 %v420, 16
    %v425 = vpop.permute.xlu0 %424
    %v427 = vsel %vm131, %v417, %v425
    %429 = vrot.lane.b32.xlu0 %v427, 32
    %v430 = vpop.permute.xlu0 %429
    %vm432 = vcmask 261120
    %v433 = vsel %vm432, %v294, %v430
    %v434 = vpack.c.bf16 %v433, %v433
    %v435 = vld [vmem:[%s2] sm:$0xf]
    %v436 = vld [vmem:[%s2 + $0x4] sm:$0xf]
    %v437 = vld [vmem:[%s2 + $0x8] sm:$0xf]
    %v438 = vld [vmem:[%s2 + $0xc] sm:$0xf]
    %v439 = vld [vmem:[%s2 + $0x10] sm:$0xf]
    %v440 = vld [vmem:[%s2 + $0x14] sm:$0xf]
    %v441 = vld [vmem:[%s2 + $0x18] sm:$0xf]
    %v442 = vld [vmem:[%s2 + $0x1c] sm:$0xf]
    %v451 = vunpack.c.l.b16 %v435
    %v452 = vunpack.c.l.b16 %v436
    %v453 = vunpack.c.l.b16 %v437
    %v454 = vunpack.c.l.b16 %v438
    %v455 = vunpack.c.l.b16 %v439
    %v456 = vunpack.c.l.b16 %v440
    %v457 = vunpack.c.l.b16 %v441
    %v458 = vunpack.c.l.b16 %v442
    %v459 = vpack.c.b16 %v452, %v451
    %v460 = vpack.c.b16 %v454, %v453
    %v461 = vpack.c.b16 %v456, %v455
    %v462 = vpack.c.b16 %v458, %v457
    %v468 = vsel %vm72, %v434, 0
    %470 = vmatprep.subr.bf16.mxu0 0
    %471 = vmatpush1.bf16.msra.mxu0 %v459
    %472 = vmatprep.subr.bf16.mxu0 0
    %473 = vmatpush1.bf16.msra.mxu0 %v460
    %474 = vmatprep.subr.bf16.mxu0 0
    %475 = vmatpush1.bf16.msra.mxu0 %v461
    %476 = vmatprep.subr.bf16.mxu0 0
    %477 = vmatpush1.bf16.msra.mxu0 %v462
    %478 = vmatprep.subr.bf16.mxu0 0
    %479 = vmatpush1.bf16.msra.mxu0 0
    %480 = vmatprep.subr.bf16.mxu0 0
    %481 = vmatpush1.bf16.msra.mxu0 0
    %482 = vmatprep.subr.bf16.mxu0 0
    %483 = vmatpush1.bf16.msra.mxu0 0
    %484 = vmatprep.subr.bf16.mxu0 0
    %485 = vmatpush1.bf16.msra.mxu0 0
    %486 = vmatprep.subr.bf16.mxu0 0
    %487 = vmatpush1.bf16.msra.mxu0 0
    %488 = vmatprep.subr.bf16.mxu0 0
    %489 = vmatpush1.bf16.msra.mxu0 0
    %490 = vmatprep.subr.bf16.mxu0 0
    %491 = vmatpush1.bf16.msra.mxu0 0
    %492 = vmatprep.subr.bf16.mxu0 0
    %493 = vmatpush1.bf16.msra.mxu0 0
    %494 = vmatprep.subr.bf16.mxu0 0
    %495 = vmatpush1.bf16.msra.mxu0 0
    %496 = vmatprep.subr.bf16.mxu0 0
    %497 = vmatpush1.bf16.msra.mxu0 0
    %498 = vmatprep.subr.bf16.mxu0 0
    %499 = vmatpush1.bf16.msra.mxu0 0
    %500 = vmatprep.subr.bf16.mxu0 0
    %501 = vmatpush1.bf16.msra.mxu0 0
    %502 = vmatprep.mubr.bf16.mxu0 0
    %503 = vmatmul.mubr.bf16.gmra.mrb[0].mxu0 %v468
    %v504 = vpop.f32.mrb[0].mxu0
    %v505 = vadd.f32 0.0, %v504
    %v506 = vpop.f32.mrb[0].mxu0
    %v507 = vpop.f32.mrb[0].mxu0
    %v508 = vpop.f32.mrb[0].mxu0
    %509 = vdwg.mxu0
    %510 = vst.msk [vmem:[#allocation2] sm:$0xff] %vm72, %v505
    // Predicated region
    $region22: #{llama_attention_forward.1} parent=1 // pred_check
      _
    $region23: #{llama_attention_forward.1} parent=1 // pred_check_branch
      %512 = sbr.rel (0) target = $region25
    $region24: #{llama_attention_forward.1} parent=1 // pred_region
      %s514 = ssub.s32 128, 128
      %515 = vsyncadd [#allocation3], %s514
      %s517 = sshll.u32 [#allocation2], 4
      %s518 = int_to_ptr.vmem [resolvable:$true] %s517
      %520 = dma.vmem_to_hbm [thread:$0]  %s518, 128, %s5, [#allocation3]
    $region25: #{llama_attention_forward.1} parent=1 // pred_fallthru
      _
    // Predicated region
    $region26: #{llama_attention_forward.1} parent=1 // pred_check
      _
    $region27: #{llama_attention_forward.1} parent=1 // pred_check_branch
      %522 = sbr.rel (0) target = $region29
    $region28: #{llama_attention_forward.1} parent=1 // pred_region
      %523 = dma.done [#allocation3], 128
    $region29: #{llama_attention_forward.1} parent=1 // pred_fallthru
      _
    %524 = vsyncpa [#allocation3], 1

</llo_original>
